<compile_context>
chip_gen: v5e
topology: v5e:2x2
jax: 0.10.0
libtpu: 0.0.40
codegen_flags: <defaults>
</compile_context>

<pallas_src>
import jax
import jax.numpy as jnp
from jax.experimental import pallas as pl
from jax.experimental.pallas import tpu as pltpu

DIM_VISUAL_REPR = 1000   # densenet201 classifier output dim (folded away at fusion time)
NUM_CLASS = 2
C_ENC = 32               # stand-in encoder conv channels
C_ENC_PAD = 128          # lane-dense padding of conv output channels
K_PAD = 32               # im2col contraction dim (3*3*3 = 27) padded for bf16 packing
N_OUT_PAD = 128          # lane-dense padding of the final logits


# ----------------------------------------------------------------------------
# Single fused kernel: conv3x3 (im2col matmul) + bias + ReLU + global-avg-pool
#                      + fused (encoder-classifier @ final-linear) head.
# ----------------------------------------------------------------------------
def _fused_forward_kernel(patch_ref, wc_ref, bc_ref, pool_ref, wf_ref, bf_ref,
                          out_ref):
    # conv3x3 as one tall im2col matmul: (B*P, K_PAD)bf16 @ (K_PAD, 128)bf16 -> f32
    y = jnp.dot(patch_ref[...], wc_ref[...],
                preferred_element_type=jnp.float32)            # (B*P, C_ENC_PAD)
    y = jnp.maximum(y + bc_ref[...], 0.0)                      # bias + ReLU (f32)

    # Global average pool per image as a matmul:
    #   pool_ref[b, r] = 1/P if row r belongs to image b else 0.
    pooled = jnp.dot(pool_ref[...], y,
                     preferred_element_type=jnp.float32)       # (B, C_ENC_PAD) f32

    # Fused head: Linear(C_ENC -> 1000) followed by Linear(1000 -> num_class),
    # folded into a single (C_ENC_PAD, N_OUT_PAD) matrix.  Exact because
    # eval-mode Dropout is identity and there is no nonlinearity between them.
    # TODO(synk): training-mode Dropout would need pltpu.prng_* masking and the
    # two linears kept separate; eval mode is what is reproduced here.
    out_ref[...] = jnp.dot(pooled.astype(jnp.bfloat16), wf_ref[...],
                           preferred_element_type=jnp.float32) + bf_ref[...]


def fused_forward(patches, w_conv, b_conv, pool_mat, w_fused, b_fused, *, batch):
    vmem = pl.BlockSpec(memory_space=pltpu.MemorySpace.VMEM)
    return pl.pallas_call(
        _fused_forward_kernel,
        out_shape=jax.ShapeDtypeStruct((batch, N_OUT_PAD), jnp.float32),
        in_specs=[vmem, vmem, vmem, vmem, vmem, vmem],
        out_specs=vmem,
    )(patches, w_conv, b_conv, pool_mat, w_fused, b_fused)


# ----------------------------------------------------------------------------
# Glue: im2col patch extraction (plain JAX; matmul hot path stays in Pallas).
# ----------------------------------------------------------------------------
def _im2col_3x3(img):
    # img: (B, C, H, W), 3x3 conv, stride 1, padding 1.
    B, C, H, W = img.shape
    xp = jnp.pad(img, ((0, 0), (0, 0), (1, 1), (1, 1)))
    cols = [xp[:, :, kh:kh + H, kw:kw + W] for kh in range(3) for kw in range(3)]
    patches = jnp.stack(cols, axis=2)                  # (B, C, 9, H, W)
    patches = patches.transpose(0, 3, 4, 1, 2)         # (B, H, W, C, 9)
    return patches.reshape(B, H * W, C * 9)            # (B, P, K), K ordered (C, 9)


# ----------------------------------------------------------------------------
# Parameter construction + head folding / lane-dense padding
# ----------------------------------------------------------------------------
def init_params(key, c_in=3):
    k = jax.random.split(key, 6)
    # stand-in conv stem: (C_out, C_in, 3, 3) -> im2col layout (C_in*9, C_out)
    w_conv = 0.05 * jax.random.normal(k[0], (C_ENC, c_in, 3, 3), jnp.float32)
    w_conv = w_conv.reshape(C_ENC, c_in * 9).T                     # (K, C_ENC)
    b_conv = 0.01 * jax.random.normal(k[1], (1, C_ENC), jnp.float32)
    # stand-in for densenet classifier Linear(C_ENC -> 1000)
    w_enc = 0.02 * jax.random.normal(k[2], (C_ENC, DIM_VISUAL_REPR), jnp.float32)
    b_enc = 0.01 * jax.random.normal(k[3], (1, DIM_VISUAL_REPR), jnp.float32)
    # ImageOnlyModel.linear : nn.Linear(1000, num_class)
    w_head = 0.02 * jax.random.normal(k[4], (DIM_VISUAL_REPR, NUM_CLASS), jnp.float32)
    b_head = 0.01 * jax.random.normal(k[5], (1, NUM_CLASS), jnp.float32)
    return dict(w_conv=w_conv, b_conv=b_conv, w_enc=w_enc, b_enc=b_enc,
                w_head=w_head, b_head=b_head)


def fuse_and_pad_params(params):
    """Fold the two head linears and zero-pad everything to lane-dense widths.

    logits = ((pooled @ w_enc + b_enc) @ w_head + b_head)
           =  pooled @ (w_enc @ w_head) + (b_enc @ w_head + b_head)
    Exact while Dropout is in eval mode (identity).
    """
    K = params["w_conv"].shape[0]
    w_fused = params["w_enc"] @ params["w_head"]                       # (C_ENC, NUM_CLASS)
    b_fused = params["b_enc"] @ params["w_head"] + params["b_head"]    # (1, NUM_CLASS)

    w_conv = jnp.zeros((K_PAD, C_ENC_PAD), jnp.float32).at[:K, :C_ENC].set(params["w_conv"])
    b_conv = jnp.zeros((1, C_ENC_PAD), jnp.float32).at[:, :C_ENC].set(params["b_conv"])
    w_f = jnp.zeros((C_ENC_PAD, N_OUT_PAD), jnp.float32).at[:C_ENC, :NUM_CLASS].set(w_fused)
    b_f = jnp.zeros((1, N_OUT_PAD), jnp.float32).at[:, :NUM_CLASS].set(b_fused)

    return dict(
        w_conv=w_conv.astype(jnp.bfloat16),   # MXU operands in bf16
        b_conv=b_conv,                        # biases / epilogue stay f32
        w_fused=w_f.astype(jnp.bfloat16),
        b_fused=b_f,
    )


# ----------------------------------------------------------------------------
# Model forward
# ----------------------------------------------------------------------------
@jax.jit
def image_only_model_forward(fused_params, image, text_ignored):
    # forward(x): image, _ = x  -- the second tuple element is ignored.
    del text_ignored
    B, _, H, W = image.shape
    P = H * W

    # TODO(synk): for real DenseNet-sized inputs, fold im2col into the kernel as
    # 9 shifted matmuls to avoid the 9x HBM expansion; at this toy size the
    # padded slab is ~32 KB so the XLA im2col is not the bottleneck.
    patches = _im2col_3x3(image)                                   # (B, P, K)
    K = patches.shape[-1]
    patches = jnp.pad(patches, ((0, 0), (0, 0), (0, K_PAD - K)))
    patches = patches.reshape(B * P, K_PAD).astype(jnp.bfloat16)   # one tall bf16 slab

    # Block-diagonal average-pooling matrix: (B, B*P), entries 1/P.
    row_to_img = jnp.arange(B * P, dtype=jnp.int32) // P
    pool_mat = (row_to_img[None, :] == jnp.arange(B, dtype=jnp.int32)[:, None])
    pool_mat = pool_mat.astype(jnp.float32) / float(P)

    out_pad = fused_forward(
        patches,
        fused_params["w_conv"], fused_params["b_conv"],
        pool_mat,
        fused_params["w_fused"], fused_params["b_fused"],
        batch=B)
    return out_pad[:, :NUM_CLASS]                                  # (B, num_class)


if __name__ == "__main__":
    key = jax.random.PRNGKey(0)
    k_img, k_txt, k_par = jax.random.split(key, 3)

    B, C, H, W = 2, 3, 16, 16
    image = jax.random.normal(k_img, (B, C, H, W), jnp.float32)
    text_ignored = jax.random.normal(k_txt, (B, 8), jnp.float32)   # x = (image, _): unused

    params = init_params(k_par, c_in=C)
    fused_params = fuse_and_pad_params(params)   # one-time fold/pad, outside the jit

    out = image_only_model_forward(fused_params, image, text_ignored)
    out = jax.block_until_ready(out)
    assert out.shape == (B, NUM_CLASS), out.shape
    assert bool(jnp.all(jnp.isfinite(out)))
    print("KERNEL_OK")
</pallas_src>

<mosaic_0001>
module attributes {stable_mosaic.version = 11 : i64} {
  func.func @_fused_forward_kernel(%arg0: memref<512x32xbf16, #tpu.memory_space<vmem>>, %arg1: memref<32x128xbf16, #tpu.memory_space<vmem>>, %arg2: memref<1x128xf32, #tpu.memory_space<vmem>>, %arg3: memref<2x512xf32, #tpu.memory_space<vmem>>, %arg4: memref<128x128xbf16, #tpu.memory_space<vmem>>, %arg5: memref<1x128xf32, #tpu.memory_space<vmem>>, %arg6: memref<2x128xf32, #tpu.memory_space<vmem>>) attributes {dimension_semantics = [], scalar_prefetch = 0 : i64, scratch_operands = 0 : i64, tpu.core_type = #tpu.core_type<tc>} {
    %c0 = arith.constant 0 : index
    %c0_0 = arith.constant 0 : index
    %0 = vector.load %arg0[%c0, %c0_0] : memref<512x32xbf16, #tpu.memory_space<vmem>>, vector<512x32xbf16>
    %c0_1 = arith.constant 0 : index
    %c0_2 = arith.constant 0 : index
    %1 = vector.load %arg1[%c0_1, %c0_2] : memref<32x128xbf16, #tpu.memory_space<vmem>>, vector<32x128xbf16>
    %cst = arith.constant dense<0.000000e+00> : vector<512x128xf32>
    %2 = tpu.matmul %0, %1, %cst {dimension_numbers = #tpu.dot_dimension_numbers<[1], [0], [0], [1], [0, 0, 1, 1], [], []>} : vector<512x32xbf16>, vector<32x128xbf16>, vector<512x128xf32> -> vector<512x128xf32>
    %c0_3 = arith.constant 0 : index
    %c0_4 = arith.constant 0 : index
    %3 = vector.load %arg2[%c0_3, %c0_4] : memref<1x128xf32, #tpu.memory_space<vmem>>, vector<1x128xf32>
    %4 = vector.broadcast %3 : vector<1x128xf32> to vector<512x128xf32>
    %5 = arith.addf %2, %4 : vector<512x128xf32>
    %cst_5 = arith.constant 0.000000e+00 : f32
    %6 = vector.broadcast %cst_5 : f32 to vector<512x128xf32>
    %7 = arith.maximumf %5, %6 : vector<512x128xf32>
    %c0_6 = arith.constant 0 : index
    %c0_7 = arith.constant 0 : index
    %8 = vector.load %arg3[%c0_6, %c0_7] : memref<2x512xf32, #tpu.memory_space<vmem>>, vector<2x512xf32>
    %cst_8 = arith.constant dense<0.000000e+00> : vector<2x128xf32>
    %9 = tpu.matmul %8, %7, %cst_8 {dimension_numbers = #tpu.dot_dimension_numbers<[1], [0], [0], [1], [0, 0, 1, 1], [], []>} : vector<2x512xf32>, vector<512x128xf32>, vector<2x128xf32> -> vector<2x128xf32>
    %10 = arith.truncf %9 : vector<2x128xf32> to vector<2x128xbf16>
    %c0_9 = arith.constant 0 : index
    %c0_10 = arith.constant 0 : index
    %11 = vector.load %arg4[%c0_9, %c0_10] : memref<128x128xbf16, #tpu.memory_space<vmem>>, vector<128x128xbf16>
    %cst_11 = arith.constant dense<0.000000e+00> : vector<2x128xf32>
    %12 = tpu.matmul %10, %11, %cst_11 {dimension_numbers = #tpu.dot_dimension_numbers<[1], [0], [0], [1], [0, 0, 1, 1], [], []>} : vector<2x128xbf16>, vector<128x128xbf16>, vector<2x128xf32> -> vector<2x128xf32>
    %c0_12 = arith.constant 0 : index
    %c0_13 = arith.constant 0 : index
    %13 = vector.load %arg5[%c0_12, %c0_13] : memref<1x128xf32, #tpu.memory_space<vmem>>, vector<1x128xf32>
    %14 = vector.broadcast %13 : vector<1x128xf32> to vector<2x128xf32>
    %15 = arith.addf %12, %14 : vector<2x128xf32>
    %c0_14 = arith.constant 0 : index
    %c0_15 = arith.constant 0 : index
    %16 = vector.load %arg6[%c0_14, %c0_15] : memref<2x128xf32, #tpu.memory_space<vmem>>, vector<2x128xf32>
    tpu.vector_store %arg6[%c0_14, %c0_15], %15 {strides = array<i32>} : memref<2x128xf32, #tpu.memory_space<vmem>>, vector<2x128xf32>,
    return
  }
}

</mosaic_0001>

<llo_original>
// kernel: image_only_model_forward.1
$region0: #{image_only_model_forward.1}
  #allocation0 [shape = 'u32[]', space=smem, size = 0x4, offset = 0x4, fixed_abs, tag = 'smem constant byte address 0x4 - core index']
  #allocation1 [shape = 'u32[72,128]{1,0:T(1,128)}', space=vmem, size = 0x9000, scoped, tag = 'internal scratch']
  %s0 = inlined_call_operand.vmem [shape: bf16[512,32], index: 0, kind: input, shape index: {}]
  %s1 = inlined_call_operand.vmem [shape: bf16[32,128], index: 1, kind: input, shape index: {}]
  %s2 = inlined_call_operand.vmem [shape: f32[1,128], index: 2, kind: input, shape index: {}]
  %s3 = inlined_call_operand.vmem [shape: f32[2,512], index: 3, kind: input, shape index: {}]
  %s4 = inlined_call_operand.vmem [shape: bf16[128,128], index: 4, kind: input, shape index: {}]
  %s5 = inlined_call_operand.vmem [shape: f32[1,128], index: 5, kind: input, shape index: {}]
  %s6 = inlined_call_operand.hbm [shape: f32[2,128], index: 6, kind: output, shape index: {}]
  %s7 = sld [smem:[#allocation0]]
  $region34: #{image_only_model_forward.1} parent=0
    _
  %s9 = ssub.s32 1, %s7
  %s10 = scalar_select 0, %s9, %s7
  $region1: #{image_only_model_forward.1} parent=0
    #allocation2 [shape = 'u8[1024]{0}', space=vmem, size = 0x400, scoped, tag = 'output window, operand 0, single buffered']
    #allocation3 [shape = 's32[1]{0}', space=sflag, size = 0x4, scoped, tag = 'scoped memory for image_only_model_forward.1']
    %11 = vsyncpa [#allocation3], 0
    // Predicated region
    $region2: #{image_only_model_forward.1} parent=1 // pred_check
      _
    $region3: #{image_only_model_forward.1} parent=1 // pred_check_branch
      %13 = sbr.rel (0) target = $region5
    $region4: #{image_only_model_forward.1} parent=1 // pred_region
      _
    $region5: #{image_only_model_forward.1} parent=1 // pred_fallthru
      _
    // Predicated region
    $region6: #{image_only_model_forward.1} parent=1 // pred_check
      _
    $region7: #{image_only_model_forward.1} parent=1 // pred_check_branch
      %15 = sbr.rel (0) target = $region9
    $region8: #{image_only_model_forward.1} parent=1 // pred_region
      _
    $region9: #{image_only_model_forward.1} parent=1 // pred_fallthru
      _
    // Predicated region
    $region10: #{image_only_model_forward.1} parent=1 // pred_check
      _
    $region11: #{image_only_model_forward.1} parent=1 // pred_check_branch
      %17 = sbr.rel (0) target = $region13
    $region12: #{image_only_model_forward.1} parent=1 // pred_region
      _
    $region13: #{image_only_model_forward.1} parent=1 // pred_fallthru
      _
    // Predicated region
    $region14: #{image_only_model_forward.1} parent=1 // pred_check
      _
    $region15: #{image_only_model_forward.1} parent=1 // pred_check_branch
      %19 = sbr.rel (0) target = $region17
    $region16: #{image_only_model_forward.1} parent=1 // pred_region
      _
    $region17: #{image_only_model_forward.1} parent=1 // pred_fallthru
      _
    // Predicated region
    $region18: #{image_only_model_forward.1} parent=1 // pred_check
      _
    $region19: #{image_only_model_forward.1} parent=1 // pred_check_branch
      %21 = sbr.rel (0) target = $region21
    $region20: #{image_only_model_forward.1} parent=1 // pred_region
      _
    $region21: #{image_only_model_forward.1} parent=1 // pred_fallthru
      _
    // Predicated region
    $region22: #{image_only_model_forward.1} parent=1 // pred_check
      _
    $region23: #{image_only_model_forward.1} parent=1 // pred_check_branch
      %23 = sbr.rel (0) target = $region25
    $region24: #{image_only_model_forward.1} parent=1 // pred_region
      _
    $region25: #{image_only_model_forward.1} parent=1 // pred_fallthru
      _
    %v25 = vld [vmem:[%s0] sm:$0xf]
    %v26 = vld [vmem:[%s0 + $0x4] sm:$0xf]
    %v27 = vld [vmem:[%s0 + $0x8] sm:$0xf]
    %v28 = vld [vmem:[%s0 + $0xc] sm:$0xf]
    %v29 = vld [vmem:[%s0 + $0x10] sm:$0xf]
    %v30 = vld [vmem:[%s0 + $0x14] sm:$0xf]
    %v31 = vld [vmem:[%s0 + $0x18] sm:$0xf]
    %v32 = vld [vmem:[%s0 + $0x1c] sm:$0xf]
    %v33 = vld [vmem:[%s0 + $0x20] sm:$0xf]
    %v34 = vld [vmem:[%s0 + $0x24] sm:$0xf]
    %v35 = vld [vmem:[%s0 + $0x28] sm:$0xf]
    %v36 = vld [vmem:[%s0 + $0x2c] sm:$0xf]
    %v37 = vld [vmem:[%s0 + $0x30] sm:$0xf]
    %v38 = vld [vmem:[%s0 + $0x34] sm:$0xf]
    %v39 = vld [vmem:[%s0 + $0x38] sm:$0xf]
    %v40 = vld [vmem:[%s0 + $0x3c] sm:$0xf]
    %v41 = vld [vmem:[%s0 + $0x40] sm:$0xf]
    %v42 = vld [vmem:[%s0 + $0x44] sm:$0xf]
    %v43 = vld [vmem:[%s0 + $0x48] sm:$0xf]
    %v44 = vld [vmem:[%s0 + $0x4c] sm:$0xf]
    %v45 = vld [vmem:[%s0 + $0x50] sm:$0xf]
    %v46 = vld [vmem:[%s0 + $0x54] sm:$0xf]
    %v47 = vld [vmem:[%s0 + $0x58] sm:$0xf]
    %v48 = vld [vmem:[%s0 + $0x5c] sm:$0xf]
    %v49 = vld [vmem:[%s0 + $0x60] sm:$0xf]
    %v50 = vld [vmem:[%s0 + $0x64] sm:$0xf]
    %v51 = vld [vmem:[%s0 + $0x68] sm:$0xf]
    %v52 = vld [vmem:[%s0 + $0x6c] sm:$0xf]
    %v53 = vld [vmem:[%s0 + $0x70] sm:$0xf]
    %v54 = vld [vmem:[%s0 + $0x74] sm:$0xf]
    %v55 = vld [vmem:[%s0 + $0x78] sm:$0xf]
    %v56 = vld [vmem:[%s0 + $0x7c] sm:$0xf]
    %v57 = vld [vmem:[%s0 + $0x80] sm:$0xf]
    %v58 = vld [vmem:[%s0 + $0x84] sm:$0xf]
    %v59 = vld [vmem:[%s0 + $0x88] sm:$0xf]
    %v60 = vld [vmem:[%s0 + $0x8c] sm:$0xf]
    %v61 = vld [vmem:[%s0 + $0x90] sm:$0xf]
    %v62 = vld [vmem:[%s0 + $0x94] sm:$0xf]
    %v63 = vld [vmem:[%s0 + $0x98] sm:$0xf]
    %v64 = vld [vmem:[%s0 + $0x9c] sm:$0xf]
    %v65 = vld [vmem:[%s0 + $0xa0] sm:$0xf]
    %v66 = vld [vmem:[%s0 + $0xa4] sm:$0xf]
    %v67 = vld [vmem:[%s0 + $0xa8] sm:$0xf]
    %v68 = vld [vmem:[%s0 + $0xac] sm:$0xf]
    %v69 = vld [vmem:[%s0 + $0xb0] sm:$0xf]
    %v70 = vld [vmem:[%s0 + $0xb4] sm:$0xf]
    %v71 = vld [vmem:[%s0 + $0xb8] sm:$0xf]
    %v72 = vld [vmem:[%s0 + $0xbc] sm:$0xf]
    %v73 = vld [vmem:[%s0 + $0xc0] sm:$0xf]
    %v74 = vld [vmem:[%s0 + $0xc4] sm:$0xf]
    %v75 = vld [vmem:[%s0 + $0xc8] sm:$0xf]
    %v76 = vld [vmem:[%s0 + $0xcc] sm:$0xf]
    %v77 = vld [vmem:[%s0 + $0xd0] sm:$0xf]
    %v78 = vld [vmem:[%s0 + $0xd4] sm:$0xf]
    %v79 = vld [vmem:[%s0 + $0xd8] sm:$0xf]
    %v80 = vld [vmem:[%s0 + $0xdc] sm:$0xf]
    %v81 = vld [vmem:[%s0 + $0xe0] sm:$0xf]
    %v82 = vld [vmem:[%s0 + $0xe4] sm:$0xf]
    %v83 = vld [vmem:[%s0 + $0xe8] sm:$0xf]
    %v84 = vld [vmem:[%s0 + $0xec] sm:$0xf]
    %v85 = vld [vmem:[%s0 + $0xf0] sm:$0xf]
    %v86 = vld [vmem:[%s0 + $0xf4] sm:$0xf]
    %v87 = vld [vmem:[%s0 + $0xf8] sm:$0xf]
    %v88 = vld [vmem:[%s0 + $0xfc] sm:$0xf]
    %v89 = vld [vmem:[%s1] sm:$0xf]
    %v90 = vld [vmem:[%s1 + $0x4] sm:$0xf]
    %v91 = vld [vmem:[%s1 + $0x8] sm:$0xf]
    %v92 = vld [vmem:[%s1 + $0xc] sm:$0xf]
    %v93 = vld [vmem:[%s2] sm:$0x1]
    %v95 = vperm.slane %v93, 0
    %v161 = vunpack.c.l.b16 %v25
    %v162 = vunpack.c.l.b16 %v26
    %v163 = vunpack.c.l.b16 %v27
    %v164 = vunpack.c.l.b16 %v28
    %v165 = vunpack.c.l.b16 %v29
    %v166 = vunpack.c.l.b16 %v30
    %v167 = vunpack.c.l.b16 %v31
    %v168 = vunpack.c.l.b16 %v32
    %v169 = vunpack.c.l.b16 %v33
    %v170 = vunpack.c.l.b16 %v34
    %v171 = vunpack.c.l.b16 %v35
    %v172 = vunpack.c.l.b16 %v36
    %v173 = vunpack.c.l.b16 %v37
    %v174 = vunpack.c.l.b16 %v38
    %v175 = vunpack.c.l.b16 %v39
    %v176 = vunpack.c.l.b16 %v40
    %v177 = vunpack.c.l.b16 %v41
    %v178 = vunpack.c.l.b16 %v42
    %v179 = vunpack.c.l.b16 %v43
    %v180 = vunpack.c.l.b16 %v44
    %v181 = vunpack.c.l.b16 %v45
    %v182 = vunpack.c.l.b16 %v46
    %v183 = vunpack.c.l.b16 %v47
    %v184 = vunpack.c.l.b16 %v48
    %v185 = vunpack.c.l.b16 %v49
    %v186 = vunpack.c.l.b16 %v50
    %v187 = vunpack.c.l.b16 %v51
    %v188 = vunpack.c.l.b16 %v52
    %v189 = vunpack.c.l.b16 %v53
    %v190 = vunpack.c.l.b16 %v54
    %v191 = vunpack.c.l.b16 %v55
    %v192 = vunpack.c.l.b16 %v56
    %v193 = vunpack.c.l.b16 %v57
    %v194 = vunpack.c.l.b16 %v58
    %v195 = vunpack.c.l.b16 %v59
    %v196 = vunpack.c.l.b16 %v60
    %v197 = vunpack.c.l.b16 %v61
    %v198 = vunpack.c.l.b16 %v62
    %v199 = vunpack.c.l.b16 %v63
    %v200 = vunpack.c.l.b16 %v64
    %v201 = vunpack.c.l.b16 %v65
    %v202 = vunpack.c.l.b16 %v66
    %v203 = vunpack.c.l.b16 %v67
    %v204 = vunpack.c.l.b16 %v68
    %v205 = vunpack.c.l.b16 %v69
    %v206 = vunpack.c.l.b16 %v70
    %v207 = vunpack.c.l.b16 %v71
    %v208 = vunpack.c.l.b16 %v72
    %v209 = vunpack.c.l.b16 %v73
    %v210 = vunpack.c.l.b16 %v74
    %v211 = vunpack.c.l.b16 %v75
    %v212 = vunpack.c.l.b16 %v76
    %v213 = vunpack.c.l.b16 %v77
    %v214 = vunpack.c.l.b16 %v78
    %v215 = vunpack.c.l.b16 %v79
    %v216 = vunpack.c.l.b16 %v80
    %v217 = vunpack.c.l.b16 %v81
    %v218 = vunpack.c.l.b16 %v82
    %v219 = vunpack.c.l.b16 %v83
    %v220 = vunpack.c.l.b16 %v84
    %v221 = vunpack.c.l.b16 %v85
    %v222 = vunpack.c.l.b16 %v86
    %v223 = vunpack.c.l.b16 %v87
    %v224 = vunpack.c.l.b16 %v88
    %v225 = vpack.c.b16 %v162, %v161
    %v226 = vpack.c.b16 %v164, %v163
    %v227 = vpack.c.b16 %v166, %v165
    %v228 = vpack.c.b16 %v168, %v167
    %v229 = vpack.c.b16 %v170, %v169
    %v230 = vpack.c.b16 %v172, %v171
    %v231 = vpack.c.b16 %v174, %v173
    %v232 = vpack.c.b16 %v176, %v175
    %v233 = vpack.c.b16 %v178, %v177
    %v234 = vpack.c.b16 %v180, %v179
    %v235 = vpack.c.b16 %v182, %v181
    %v236 = vpack.c.b16 %v184, %v183
    %v237 = vpack.c.b16 %v186, %v185
    %v238 = vpack.c.b16 %v188, %v187
    %v239 = vpack.c.b16 %v190, %v189
    %v240 = vpack.c.b16 %v192, %v191
    %v241 = vpack.c.b16 %v194, %v193
    %v242 = vpack.c.b16 %v196, %v195
    %v243 = vpack.c.b16 %v198, %v197
    %v244 = vpack.c.b16 %v200, %v199
    %v245 = vpack.c.b16 %v202, %v201
    %v246 = vpack.c.b16 %v204, %v203
    %v247 = vpack.c.b16 %v206, %v205
    %v248 = vpack.c.b16 %v208, %v207
    %v249 = vpack.c.b16 %v210, %v209
    %v250 = vpack.c.b16 %v212, %v211
    %v251 = vpack.c.b16 %v214, %v213
    %v252 = vpack.c.b16 %v216, %v215
    %v253 = vpack.c.b16 %v218, %v217
    %v254 = vpack.c.b16 %v220, %v219
    %v255 = vpack.c.b16 %v222, %v221
    %v256 = vpack.c.b16 %v224, %v223
    %v261 = vunpack.c.l.b16 %v89
    %v262 = vunpack.c.l.b16 %v90
    %v263 = vunpack.c.l.b16 %v91
    %v264 = vunpack.c.l.b16 %v92
    %v265 = vpack.c.b16 %v262, %v261
    %v266 = vpack.c.b16 %v264, %v263
    %vm269 = vcmask 261120
    %v271 = vsel %vm269, %v225, 0
    %v274 = vsel %vm269, %v226, 0
    %v277 = vsel %vm269, %v227, 0
    %v280 = vsel %vm269, %v228, 0
    %v283 = vsel %vm269, %v229, 0
    %v286 = vsel %vm269, %v230, 0
    %v289 = vsel %vm269, %v231, 0
    %v292 = vsel %vm269, %v232, 0
    %v295 = vsel %vm269, %v233, 0
    %v298 = vsel %vm269, %v234, 0
    %v301 = vsel %vm269, %v235, 0
    %v304 = vsel %vm269, %v236, 0
    %v307 = vsel %vm269, %v237, 0
    %v310 = vsel %vm269, %v238, 0
    %v313 = vsel %vm269, %v239, 0
    %v316 = vsel %vm269, %v240, 0
    %v319 = vsel %vm269, %v241, 0
    %v322 = vsel %vm269, %v242, 0
    %v325 = vsel %vm269, %v243, 0
    %v328 = vsel %vm269, %v244, 0
    %v331 = vsel %vm269, %v245, 0
    %v334 = vsel %vm269, %v246, 0
    %v337 = vsel %vm269, %v247, 0
    %v340 = vsel %vm269, %v248, 0
    %v343 = vsel %vm269, %v249, 0
    %v346 = vsel %vm269, %v250, 0
    %v349 = vsel %vm269, %v251, 0
    %v352 = vsel %vm269, %v252, 0
    %v355 = vsel %vm269, %v253, 0
    %v358 = vsel %vm269, %v254, 0
    %v361 = vsel %vm269, %v255, 0
    %v364 = vsel %vm269, %v256, 0
    %366 = vmatpush.bf16.msra.mxu0 0
    %367 = vmatpush.bf16.msra.mxu0 0
    %368 = vmatpush.bf16.msra.mxu0 0
    %369 = vmatpush.bf16.msra.mxu0 0
    %370 = vmatpush.bf16.msra.mxu0 0
    %371 = vmatpush.bf16.msra.mxu0 0
    %372 = vmatpush.bf16.msra.mxu0 %v266
    %373 = vmatpush.bf16.msra.mxu0 %v265
    %374 = vmatmul.bf16.gmra.mxu0 %v271
    %v375 = vpop.f32.mrf.mxu0
    %v376 = vadd.f32 %v95, %v375
    %v377 = vpop.f32.mrf.mxu0
    %v378 = vadd.f32 %v95, %v377
    %379 = vmatmul.bf16.gmra.mxu0 %v274
    %v380 = vpop.f32.mrf.mxu0
    %v381 = vadd.f32 %v95, %v380
    %v382 = vpop.f32.mrf.mxu0
    %v383 = vadd.f32 %v95, %v382
    %384 = vmatmul.bf16.gmra.mxu0 %v277
    %v385 = vpop.f32.mrf.mxu0
    %v386 = vadd.f32 %v95, %v385
    %v387 = vpop.f32.mrf.mxu0
    %v388 = vadd.f32 %v95, %v387
    %389 = vmatmul.bf16.gmra.mxu0 %v280
    %v390 = vpop.f32.mrf.mxu0
    %v391 = vadd.f32 %v95, %v390
    %v392 = vpop.f32.mrf.mxu0
    %v393 = vadd.f32 %v95, %v392
    %394 = vmatmul.bf16.gmra.mxu0 %v283
    %v395 = vpop.f32.mrf.mxu0
    %v396 = vadd.f32 %v95, %v395
    %v397 = vpop.f32.mrf.mxu0
    %v398 = vadd.f32 %v95, %v397
    %399 = vmatmul.bf16.gmra.mxu0 %v286
    %v400 = vpop.f32.mrf.mxu0
    %v401 = vadd.f32 %v95, %v400
    %v402 = vpop.f32.mrf.mxu0
    %v403 = vadd.f32 %v95, %v402
    %404 = vmatmul.bf16.gmra.mxu0 %v289
    %v405 = vpop.f32.mrf.mxu0
    %v406 = vadd.f32 %v95, %v405
    %v407 = vpop.f32.mrf.mxu0
    %v408 = vadd.f32 %v95, %v407
    %409 = vmatmul.bf16.gmra.mxu0 %v292
    %v410 = vpop.f32.mrf.mxu0
    %v411 = vadd.f32 %v95, %v410
    %v412 = vpop.f32.mrf.mxu0
    %v413 = vadd.f32 %v95, %v412
    %414 = vmatmul.bf16.gmra.mxu0 %v295
    %v415 = vpop.f32.mrf.mxu0
    %v416 = vadd.f32 %v95, %v415
    %v417 = vpop.f32.mrf.mxu0
    %v418 = vadd.f32 %v95, %v417
    %419 = vmatmul.bf16.gmra.mxu0 %v298
    %v420 = vpop.f32.mrf.mxu0
    %v421 = vadd.f32 %v95, %v420
    %v422 = vpop.f32.mrf.mxu0
    %v423 = vadd.f32 %v95, %v422
    %424 = vmatmul.bf16.gmra.mxu0 %v301
    %v425 = vpop.f32.mrf.mxu0
    %v426 = vadd.f32 %v95, %v425
    %v427 = vpop.f32.mrf.mxu0
    %v428 = vadd.f32 %v95, %v427
    %429 = vmatmul.bf16.gmra.mxu0 %v304
    %v430 = vpop.f32.mrf.mxu0
    %v431 = vadd.f32 %v95, %v430
    %v432 = vpop.f32.mrf.mxu0
    %v433 = vadd.f32 %v95, %v432
    %434 = vmatmul.bf16.gmra.mxu0 %v307
    %v435 = vpop.f32.mrf.mxu0
    %v436 = vadd.f32 %v95, %v435
    %v437 = vpop.f32.mrf.mxu0
    %v438 = vadd.f32 %v95, %v437
    %439 = vmatmul.bf16.gmra.mxu0 %v310
    %v440 = vpop.f32.mrf.mxu0
    %v441 = vadd.f32 %v95, %v440
    %v442 = vpop.f32.mrf.mxu0
    %v443 = vadd.f32 %v95, %v442
    %444 = vmatmul.bf16.gmra.mxu0 %v313
    %v445 = vpop.f32.mrf.mxu0
    %v446 = vadd.f32 %v95, %v445
    %v447 = vpop.f32.mrf.mxu0
    %v448 = vadd.f32 %v95, %v447
    %449 = vmatmul.bf16.gmra.mxu0 %v316
    %v450 = vpop.f32.mrf.mxu0
    %v451 = vadd.f32 %v95, %v450
    %v452 = vpop.f32.mrf.mxu0
    %v453 = vadd.f32 %v95, %v452
    %454 = vmatmul.bf16.gmra.mxu0 %v319
    %v455 = vpop.f32.mrf.mxu0
    %v456 = vadd.f32 %v95, %v455
    %v457 = vpop.f32.mrf.mxu0
    %v458 = vadd.f32 %v95, %v457
    %459 = vmatmul.bf16.gmra.mxu0 %v322
    %v460 = vpop.f32.mrf.mxu0
    %v461 = vadd.f32 %v95, %v460
    %v462 = vpop.f32.mrf.mxu0
    %v463 = vadd.f32 %v95, %v462
    %464 = vmatmul.bf16.gmra.mxu0 %v325
    %v465 = vpop.f32.mrf.mxu0
    %v466 = vadd.f32 %v95, %v465
    %v467 = vpop.f32.mrf.mxu0
    %v468 = vadd.f32 %v95, %v467
    %469 = vmatmul.bf16.gmra.mxu0 %v328
    %v470 = vpop.f32.mrf.mxu0
    %v471 = vadd.f32 %v95, %v470
    %v472 = vpop.f32.mrf.mxu0
    %v473 = vadd.f32 %v95, %v472
    %474 = vmatmul.bf16.gmra.mxu0 %v331
    %v475 = vpop.f32.mrf.mxu0
    %v476 = vadd.f32 %v95, %v475
    %v477 = vpop.f32.mrf.mxu0
    %v478 = vadd.f32 %v95, %v477
    %479 = vmatmul.bf16.gmra.mxu0 %v334
    %v480 = vpop.f32.mrf.mxu0
    %v481 = vadd.f32 %v95, %v480
    %v482 = vpop.f32.mrf.mxu0
    %v483 = vadd.f32 %v95, %v482
    %484 = vmatmul.bf16.gmra.mxu0 %v337
    %v485 = vpop.f32.mrf.mxu0
    %v486 = vadd.f32 %v95, %v485
    %v487 = vpop.f32.mrf.mxu0
    %v488 = vadd.f32 %v95, %v487
    %489 = vmatmul.bf16.gmra.mxu0 %v340
    %v490 = vpop.f32.mrf.mxu0
    %v491 = vadd.f32 %v95, %v490
    %v492 = vpop.f32.mrf.mxu0
    %v493 = vadd.f32 %v95, %v492
    %494 = vmatmul.bf16.gmra.mxu0 %v343
    %v495 = vpop.f32.mrf.mxu0
    %v496 = vadd.f32 %v95, %v495
    %v497 = vpop.f32.mrf.mxu0
    %v498 = vadd.f32 %v95, %v497
    %499 = vmatmul.bf16.gmra.mxu0 %v346
    %v500 = vpop.f32.mrf.mxu0
    %v501 = vadd.f32 %v95, %v500
    %v502 = vpop.f32.mrf.mxu0
    %v503 = vadd.f32 %v95, %v502
    %504 = vmatmul.bf16.gmra.mxu0 %v349
    %v505 = vpop.f32.mrf.mxu0
    %v506 = vadd.f32 %v95, %v505
    %v507 = vpop.f32.mrf.mxu0
    %v508 = vadd.f32 %v95, %v507
    %509 = vmatmul.bf16.gmra.mxu0 %v352
    %v510 = vpop.f32.mrf.mxu0
    %v511 = vadd.f32 %v95, %v510
    %v512 = vpop.f32.mrf.mxu0
    %v513 = vadd.f32 %v95, %v512
    %514 = vmatmul.bf16.gmra.mxu0 %v355
    %v515 = vpop.f32.mrf.mxu0
    %v516 = vadd.f32 %v95, %v515
    %v517 = vpop.f32.mrf.mxu0
    %v518 = vadd.f32 %v95, %v517
    %519 = vmatmul.bf16.gmra.mxu0 %v358
    %v520 = vpop.f32.mrf.mxu0
    %v521 = vadd.f32 %v95, %v520
    %v522 = vpop.f32.mrf.mxu0
    %v523 = vadd.f32 %v95, %v522
    %524 = vmatmul.bf16.gmra.mxu0 %v361
    %v525 = vpop.f32.mrf.mxu0
    %v526 = vadd.f32 %v95, %v525
    %v527 = vpop.f32.mrf.mxu0
    %v528 = vadd.f32 %v95, %v527
    %529 = vmatmul.bf16.gmra.mxu0 %v364
    %v530 = vpop.f32.mrf.mxu0
    %v531 = vadd.f32 %v95, %v530
    %v532 = vpop.f32.mrf.mxu0
    %v533 = vadd.f32 %v95, %v532
    %534 = vdwg.mxu0
    %v535 = vmax.f32 %v376, 0.0
    %v536 = vmax.f32 %v378, 0.0
    %v537 = vmax.f32 %v381, 0.0
    %v538 = vmax.f32 %v383, 0.0
    %v539 = vmax.f32 %v386, 0.0
    %v540 = vmax.f32 %v388, 0.0
    %v541 = vmax.f32 %v391, 0.0
    %v542 = vmax.f32 %v393, 0.0
    %v543 = vmax.f32 %v396, 0.0
    %v544 = vmax.f32 %v398, 0.0
    %v545 = vmax.f32 %v401, 0.0
    %v546 = vmax.f32 %v403, 0.0
    %v547 = vmax.f32 %v406, 0.0
    %v548 = vmax.f32 %v408, 0.0
    %v549 = vmax.f32 %v411, 0.0
    %v550 = vmax.f32 %v413, 0.0
    %v551 = vmax.f32 %v416, 0.0
    %v552 = vmax.f32 %v418, 0.0
    %v553 = vmax.f32 %v421, 0.0
    %v554 = vmax.f32 %v423, 0.0
    %v555 = vmax.f32 %v426, 0.0
    %v556 = vmax.f32 %v428, 0.0
    %v557 = vmax.f32 %v431, 0.0
    %v558 = vmax.f32 %v433, 0.0
    %v559 = vmax.f32 %v436, 0.0
    %v560 = vmax.f32 %v438, 0.0
    %v561 = vmax.f32 %v441, 0.0
    %v562 = vmax.f32 %v443, 0.0
    %v563 = vmax.f32 %v446, 0.0
    %v564 = vmax.f32 %v448, 0.0
    %v565 = vmax.f32 %v451, 0.0
    %v566 = vmax.f32 %v453, 0.0
    %v567 = vmax.f32 %v456, 0.0
    %v568 = vmax.f32 %v458, 0.0
    %v569 = vmax.f32 %v461, 0.0
    %v570 = vmax.f32 %v463, 0.0
    %v571 = vmax.f32 %v466, 0.0
    %v572 = vmax.f32 %v468, 0.0
    %v573 = vmax.f32 %v471, 0.0
    %v574 = vmax.f32 %v473, 0.0
    %v575 = vmax.f32 %v476, 0.0
    %v576 = vmax.f32 %v478, 0.0
    %v577 = vmax.f32 %v481, 0.0
    %v578 = vmax.f32 %v483, 0.0
    %v579 = vmax.f32 %v486, 0.0
    %v580 = vmax.f32 %v488, 0.0
    %v581 = vmax.f32 %v491, 0.0
    %v582 = vmax.f32 %v493, 0.0
    %v583 = vmax.f32 %v496, 0.0
    %v584 = vmax.f32 %v498, 0.0
    %v585 = vmax.f32 %v501, 0.0
    %v586 = vmax.f32 %v503, 0.0
    %v587 = vmax.f32 %v506, 0.0
    %v588 = vmax.f32 %v508, 0.0
    %v589 = vmax.f32 %v511, 0.0
    %v590 = vmax.f32 %v513, 0.0
    %v591 = vmax.f32 %v516, 0.0
    %v592 = vmax.f32 %v518, 0.0
    %v593 = vmax.f32 %v521, 0.0
    %v594 = vmax.f32 %v523, 0.0
    %v595 = vmax.f32 %v526, 0.0
    %v596 = vmax.f32 %v528, 0.0
    %v597 = vmax.f32 %v531, 0.0
    %v598 = vmax.f32 %v533, 0.0
    %v599 = vld [vmem:[%s3] sm:$0xff]
    %601 = vst [vmem:[#allocation1] ss:$4 sm:$0xff] %v599
    %v602 = vld.sshfl [vmem:[#allocation1] sm:$0xff pattern:$0x73625140]
    %v603 = vld.sshfl [vmem:[#allocation1 + $0x8] sm:$0xff pattern:$0x73625140]
    %v604 = vld.sshfl [vmem:[#allocation1 + $0x10] sm:$0xff pattern:$0x73625140]
    %v605 = vld.sshfl [vmem:[#allocation1 + $0x18] sm:$0xff pattern:$0x73625140]
    %610 = vmatpush.msra.mxu0 %v550
    %611 = vmatpush.msra.mxu0 %v549
    %612 = vmatpush.msra.mxu0 %v548
    %613 = vmatpush.msra.mxu0 %v547
    %614 = vmatpush.msra.mxu0 %v546
    %615 = vmatpush.msra.mxu0 %v545
    %616 = vmatpush.msra.mxu0 %v544
    %617 = vmatpush.msra.mxu0 %v543
    %618 = vmatpush.msra.mxu0 %v542
    %619 = vmatpush.msra.mxu0 %v541
    %620 = vmatpush.msra.mxu0 %v540
    %621 = vmatpush.msra.mxu0 %v539
    %622 = vmatpush.msra.mxu0 %v538
    %623 = vmatpush.msra.mxu0 %v537
    %624 = vmatpush.msra.mxu0 %v536
    %625 = vmatpush.msra.mxu0 %v535
    %626 = vmatmul.f32.gmra.mxu0 %v602
    %v627 = vpop.f32.mrf.mxu0
    %v628 = vadd.f32 0.0, %v627
    %629 = vdwg.mxu0
    %630 = vmatpush.msra.mxu0 %v566
    %631 = vmatpush.msra.mxu0 %v565
    %632 = vmatpush.msra.mxu0 %v564
    %633 = vmatpush.msra.mxu0 %v563
    %634 = vmatpush.msra.mxu0 %v562
    %635 = vmatpush.msra.mxu0 %v561
    %636 = vmatpush.msra.mxu0 %v560
    %637 = vmatpush.msra.mxu0 %v559
    %638 = vmatpush.msra.mxu0 %v558
    %639 = vmatpush.msra.mxu0 %v557
    %640 = vmatpush.msra.mxu0 %v556
    %641 = vmatpush.msra.mxu0 %v555
    %642 = vmatpush.msra.mxu0 %v554
    %643 = vmatpush.msra.mxu0 %v553
    %644 = vmatpush.msra.mxu0 %v552
    %645 = vmatpush.msra.mxu0 %v551
    %646 = vmatmul.f32.gmra.mxu0 %v603
    %v647 = vpop.f32.mrf.mxu0
    %v648 = vadd.f32 %v628, %v647
    %649 = vdwg.mxu0
    %650 = vmatpush.msra.mxu0 %v582
    %651 = vmatpush.msra.mxu0 %v581
    %652 = vmatpush.msra.mxu0 %v580
    %653 = vmatpush.msra.mxu0 %v579
    %654 = vmatpush.msra.mxu0 %v578
    %655 = vmatpush.msra.mxu0 %v577
    %656 = vmatpush.msra.mxu0 %v576
    %657 = vmatpush.msra.mxu0 %v575
    %658 = vmatpush.msra.mxu0 %v574
    %659 = vmatpush.msra.mxu0 %v573
    %660 = vmatpush.msra.mxu0 %v572
    %661 = vmatpush.msra.mxu0 %v571
    %662 = vmatpush.msra.mxu0 %v570
    %663 = vmatpush.msra.mxu0 %v569
    %664 = vmatpush.msra.mxu0 %v568
    %665 = vmatpush.msra.mxu0 %v567
    %666 = vmatmul.f32.gmra.mxu0 %v604
    %v667 = vpop.f32.mrf.mxu0
    %v668 = vadd.f32 %v648, %v667
    %669 = vdwg.mxu0
    %670 = vmatpush.msra.mxu0 %v598
    %671 = vmatpush.msra.mxu0 %v597
    %672 = vmatpush.msra.mxu0 %v596
    %673 = vmatpush.msra.mxu0 %v595
    %674 = vmatpush.msra.mxu0 %v594
    %675 = vmatpush.msra.mxu0 %v593
    %676 = vmatpush.msra.mxu0 %v592
    %677 = vmatpush.msra.mxu0 %v591
    %678 = vmatpush.msra.mxu0 %v590
    %679 = vmatpush.msra.mxu0 %v589
    %680 = vmatpush.msra.mxu0 %v588
    %681 = vmatpush.msra.mxu0 %v587
    %682 = vmatpush.msra.mxu0 %v586
    %683 = vmatpush.msra.mxu0 %v585
    %684 = vmatpush.msra.mxu0 %v584
    %685 = vmatpush.msra.mxu0 %v583
    %686 = vmatmul.f32.gmra.mxu0 %v605
    %v687 = vpop.f32.mrf.mxu0
    %v688 = vadd.f32 %v668, %v687
    %689 = vdwg.mxu0
    %v690 = vpack.c.bf16 %v688, %v688
    %v691 = vld [vmem:[%s4] sm:$0xf]
    %v692 = vld [vmem:[%s4 + $0x4] sm:$0xf]
    %v693 = vld [vmem:[%s4 + $0x8] sm:$0xf]
    %v694 = vld [vmem:[%s4 + $0xc] sm:$0xf]
    %v695 = vld [vmem:[%s4 + $0x10] sm:$0xf]
    %v696 = vld [vmem:[%s4 + $0x14] sm:$0xf]
    %v697 = vld [vmem:[%s4 + $0x18] sm:$0xf]
    %v698 = vld [vmem:[%s4 + $0x1c] sm:$0xf]
    %v699 = vld [vmem:[%s4 + $0x20] sm:$0xf]
    %v700 = vld [vmem:[%s4 + $0x24] sm:$0xf]
    %v701 = vld [vmem:[%s4 + $0x28] sm:$0xf]
    %v702 = vld [vmem:[%s4 + $0x2c] sm:$0xf]
    %v703 = vld [vmem:[%s4 + $0x30] sm:$0xf]
    %v704 = vld [vmem:[%s4 + $0x34] sm:$0xf]
    %v705 = vld [vmem:[%s4 + $0x38] sm:$0xf]
    %v706 = vld [vmem:[%s4 + $0x3c] sm:$0xf]
    %v707 = vld [vmem:[%s5] sm:$0x1]
    %v709 = vperm.slane %v707, 0
    %v727 = vunpack.c.l.b16 %v691
    %v728 = vunpack.c.l.b16 %v692
    %v729 = vunpack.c.l.b16 %v693
    %v730 = vunpack.c.l.b16 %v694
    %v731 = vunpack.c.l.b16 %v695
    %v732 = vunpack.c.l.b16 %v696
    %v733 = vunpack.c.l.b16 %v697
    %v734 = vunpack.c.l.b16 %v698
    %v735 = vunpack.c.l.b16 %v699
    %v736 = vunpack.c.l.b16 %v700
    %v737 = vunpack.c.l.b16 %v701
    %v738 = vunpack.c.l.b16 %v702
    %v739 = vunpack.c.l.b16 %v703
    %v740 = vunpack.c.l.b16 %v704
    %v741 = vunpack.c.l.b16 %v705
    %v742 = vunpack.c.l.b16 %v706
    %v743 = vpack.c.b16 %v728, %v727
    %v744 = vpack.c.b16 %v730, %v729
    %v745 = vpack.c.b16 %v732, %v731
    %v746 = vpack.c.b16 %v734, %v733
    %v747 = vpack.c.b16 %v736, %v735
    %v748 = vpack.c.b16 %v738, %v737
    %v749 = vpack.c.b16 %v740, %v739
    %v750 = vpack.c.b16 %v742, %v741
    %759 = vmatpush.bf16.msra.mxu0 %v750
    %760 = vmatpush.bf16.msra.mxu0 %v749
    %761 = vmatpush.bf16.msra.mxu0 %v748
    %762 = vmatpush.bf16.msra.mxu0 %v747
    %763 = vmatpush.bf16.msra.mxu0 %v746
    %764 = vmatpush.bf16.msra.mxu0 %v745
    %765 = vmatpush.bf16.msra.mxu0 %v744
    %766 = vmatpush.bf16.msra.mxu0 %v743
    %767 = vmatmul.bf16.gmra.mxu0 %v690
    %v768 = vpop.f32.mrf.mxu0
    %v769 = vadd.f32 %v709, %v768
    %v770 = vpop.f32.mrf.mxu0
    %771 = vdwg.mxu0
    %772 = vst [vmem:[#allocation2] sm:$0x3] %v769
    // Predicated region
    $region26: #{image_only_model_forward.1} parent=1 // pred_check
      _
    $region27: #{image_only_model_forward.1} parent=1 // pred_check_branch
      %774 = sbr.rel (0) target = $region29
    $region28: #{image_only_model_forward.1} parent=1 // pred_region
      %776 = vsyncadd [#allocation3], 0
      %s778 = sshll.u32 [#allocation2], 4
      %s779 = int_to_ptr.vmem [resolvable:$true] %s778
      %s780 = sshll.u32 %s6, 4
      %s781 = int_to_ptr.hbm [resolvable:$true] %s780
      %783 = dma.vmem_to_hbm [thread:$0]  %s779, 32, %s781, [#allocation3]
    $region29: #{image_only_model_forward.1} parent=1 // pred_fallthru
      _
    // Predicated region
    $region30: #{image_only_model_forward.1} parent=1 // pred_check
      _
    $region31: #{image_only_model_forward.1} parent=1 // pred_check_branch
      %785 = sbr.rel (0) target = $region33
    $region32: #{image_only_model_forward.1} parent=1 // pred_region
      %787 = dma.done [#allocation3], 32
    $region33: #{image_only_model_forward.1} parent=1 // pred_fallthru
      _
    %788 = vsyncpa [#allocation3], 1

</llo_original>
